<compile_context>
chip_gen: v7x
topology: tpu7x:2x2x1
jax: 0.10.0
libtpu: 0.0.40
codegen_flags: <defaults>
</compile_context>

<pallas_src>
import functools

import jax
import jax.numpy as jnp
from jax.experimental import pallas as pl
from jax.experimental.pallas import tpu as pltpu

_LANES = 128


def _cdiv(a, b):
    return -(-a // b)


def _tiled_mse_kernel(yp_ref, yt_ref, row_out_ref, sq_out_ref, *,
                      s_valid, s_block, tiles_per_chunk, need_mask):
    """Accumulate lane-wide per-image diff sums and squared-diff sums.

    yp_ref / yt_ref : (B, s_block, 128) VMEM tiles (native input dtype)
    row_out_ref     : (1, B, 128) f32, per-chunk lane-wide sum of (yp - yt)
    sq_out_ref      : (1, B, 128) f32, per-chunk lane-wide sum of (yp - yt)^2
    """
    t = pl.program_id(1)

    @pl.when(t == 0)
    def _init():
        row_out_ref[...] = jnp.zeros_like(row_out_ref)
        sq_out_ref[...] = jnp.zeros_like(sq_out_ref)

    diff = yp_ref[...].astype(jnp.float32) - yt_ref[...].astype(jnp.float32)

    if need_mask:
        # Zero out sublanes past the real data (ragged edge tile and clamped
        # duplicate tiles when the tile count doesn't split evenly by chunk).
        p = pl.program_id(0)
        s_start = (p * tiles_per_chunk + t) * s_block
        s_idx = jax.lax.broadcasted_iota(jnp.int32, diff.shape, 1) + s_start
        diff = jnp.where(s_idx < s_valid, diff, 0.0)

    # Sublane-axis reduction only (mostly plain vreg adds on the VPU); the
    # cross-lane reduction is deferred to the tiny wrapper-side combine.
    row_out_ref[...] += jnp.sum(diff, axis=1)[None]
    sq_out_ref[...] += jnp.sum(diff * diff, axis=1)[None]


def tiled_mse(y_pred, y_true, bias=0.2, target_block_bytes=2 * 1024 * 1024):
    """Pallas implementation of TiledMSE.forward. Inputs are NCHW (or any (B, ...))."""
    assert y_pred.shape == y_true.shape
    assert y_pred.dtype == y_true.dtype
    B = int(y_pred.shape[0])
    N = 1
    for d in y_pred.shape[1:]:
        N *= int(d)

    dbytes = jnp.dtype(y_pred.dtype).itemsize

    # Flatten per-image dims onto (sublane, lane); keep native dtype.
    yp = y_pred.reshape(B, N)
    yt = y_true.reshape(B, N)
    n128 = _cdiv(N, _LANES) * _LANES
    if n128 != N:
        # Rare path: pad both inputs identically with zeros so the pad
        # contributes exactly 0 to both sums (one extra copy pass).
        pad = ((0, 0), (0, n128 - N))
        yp = jnp.pad(yp, pad)
        yt = jnp.pad(yt, pad)
    S = n128 // _LANES
    yp = yp.reshape(B, S, _LANES)
    yt = yt.reshape(B, S, _LANES)

    # Tile S so each input block is ~target_block_bytes; keeps
    # 2 inputs x 2 buffers well under scoped VMEM on every generation.
    s_target = (target_block_bytes // (B * _LANES * dbytes)) // 8 * 8
    s_target = max(8, int(s_target))
    if S <= s_target:
        s_block = S          # block equals the full dim (allowed by (8,128) rule)
    else:
        s_block = s_target   # multiple of 8
    num_tiles = _cdiv(S, s_block)

    # Leading "parallel" axis: two independent chunks so v7x's 2nd TensorCore
    # is used; each chunk produces its own partial (row, sq) output slice.
    num_chunks = 2 if num_tiles >= 2 else 1
    tiles_per_chunk = _cdiv(num_tiles, num_chunks)

    need_mask = (S % s_block != 0) or (num_chunks * tiles_per_chunk != num_tiles)

    def in_index_map(p, t):
        # Clamp over-run (p, t) pairs onto the last real tile; the in-kernel
        # mask zeroes their contribution.
        return (0, jnp.minimum(p * tiles_per_chunk + t, num_tiles - 1), 0)

    kernel = functools.partial(
        _tiled_mse_kernel,
        s_valid=S,
        s_block=s_block,
        tiles_per_chunk=tiles_per_chunk,
        need_mask=need_mask,
    )

    row_partial, sq_partial = pl.pallas_call(
        kernel,
        out_shape=(
            jax.ShapeDtypeStruct((num_chunks, B, _LANES), jnp.float32),
            jax.ShapeDtypeStruct((num_chunks, B, _LANES), jnp.float32),
        ),
        grid_spec=pltpu.PrefetchScalarGridSpec(
            num_scalar_prefetch=0,
            grid=(num_chunks, tiles_per_chunk),
            in_specs=[
                pl.BlockSpec((B, s_block, _LANES), in_index_map),
                pl.BlockSpec((B, s_block, _LANES), in_index_map),
            ],
            out_specs=[
                pl.BlockSpec((1, B, _LANES), lambda p, t: (p, 0, 0)),
                pl.BlockSpec((1, B, _LANES), lambda p, t: (p, 0, 0)),
            ],
        ),
        compiler_params=pltpu.CompilerParams(
            dimension_semantics=("parallel", "arbitrary"),
            vmem_limit_bytes=32 * 1024 * 1024,
        ),
    )(yp, yt)

    # Tiny combine (num_chunks * B * 128 floats) in plain JAX.
    row_sums = jnp.sum(row_partial, axis=(0, 2))        # (B,) sum_j (pred - true)
    sq_sum = jnp.sum(sq_partial)                        # () sum of squared diffs
    row_means = row_sums / jnp.float32(N)               # mean(pred) - mean(true)
    sum_mse = jnp.mean(row_means * row_means)
    mse = sq_sum / jnp.float32(B * N)
    return sum_mse * jnp.float32(1.0 - bias) + mse * jnp.float32(bias)


def tiled_mse_reference(y_pred, y_true, bias=0.2):
    """Pure-JAX reference mirroring the PyTorch module."""
    n = y_pred.shape[1] * y_pred.shape[2] * y_pred.shape[3]
    yp_sum = jnp.sum(y_pred, axis=(1, 2, 3)) / n
    yt_sum = jnp.sum(y_true, axis=(1, 2, 3)) / n
    sum_mse = jnp.mean((yp_sum - yt_sum) ** 2)
    mse = jnp.mean((y_pred - y_true) ** 2)
    return sum_mse * (1.0 - bias) + mse * bias


if __name__ == "__main__":
    key = jax.random.PRNGKey(0)

    # Primary test: small NCHW shape, single tile, no masking.
    k1, k2, k3, k4 = jax.random.split(key, 4)
    B, C, H, W = 2, 4, 16, 16
    y_pred = jax.random.normal(k1, (B, C, H, W), dtype=jnp.float32)
    y_true = jax.random.normal(k2, (B, C, H, W), dtype=jnp.float32)
    out = jax.block_until_ready(tiled_mse(y_pred, y_true, bias=0.2))
    ref = tiled_mse_reference(y_pred, y_true, bias=0.2)
    assert jnp.allclose(out, ref, rtol=1e-5, atol=1e-6), (out, ref)

    # Secondary test: exercises the multi-chunk / ragged-tile / mask path by
    # forcing a tiny per-block byte target (S=20, s_block=8, 2 parallel chunks).
    y_pred2 = jax.random.normal(k3, (2, 10, 16, 16), dtype=jnp.float32)
    y_true2 = jax.random.normal(k4, (2, 10, 16, 16), dtype=jnp.float32)
    out2 = jax.block_until_ready(
        tiled_mse(y_pred2, y_true2, bias=0.2, target_block_bytes=8192))
    ref2 = tiled_mse_reference(y_pred2, y_true2, bias=0.2)
    assert jnp.allclose(out2, ref2, rtol=1e-5, atol=1e-6), (out2, ref2)

    print("KERNEL_OK")
</pallas_src>

<mosaic_0001>
module attributes {stable_mosaic.version = 11 : i64} {
  func.func @_tiled_mse_kernel(%arg0: i32, %arg1: i32, %arg2: memref<2x8x128xf32, #tpu.memory_space<vmem>>, %arg3: memref<2x8x128xf32, #tpu.memory_space<vmem>>, %arg4: memref<1x2x128xf32, #tpu.memory_space<vmem>>, %arg5: memref<1x2x128xf32, #tpu.memory_space<vmem>>) attributes {dimension_semantics = [#tpu.dimension_semantics<parallel>, #tpu.dimension_semantics<arbitrary>], iteration_bounds = array<i64: 1, 1>, scalar_prefetch = 0 : i64, scratch_operands = 0 : i64, tpu.core_type = #tpu.core_type<tc>, window_params = [{transform_indices = @transform_0, window_bounds = array<i64: 2, 8, 128>}, {transform_indices = @transform_1, window_bounds = array<i64: 2, 8, 128>}, {transform_indices = @transform_2, window_bounds = array<i64: 1, 2, 128>}, {transform_indices = @transform_3, window_bounds = array<i64: 1, 2, 128>}]} {
    %c0_i32 = arith.constant 0 : i32
    %0 = arith.cmpi eq, %arg1, %c0_i32 : i32
    %1 = arith.extui %0 : i1 to i32
    %c0_i32_0 = arith.constant 0 : i32
    %2 = arith.cmpi ne, %1, %c0_i32_0 : i32
    scf.if %2 {
      %cst_19 = arith.constant 0.000000e+00 : f32
      %17 = vector.broadcast %cst_19 : f32 to vector<1x2x128xf32>
      %c0_20 = arith.constant 0 : index
      %c0_21 = arith.constant 0 : index
      %c0_22 = arith.constant 0 : index
      %18 = vector.load %arg4[%c0_20, %c0_21, %c0_22] : memref<1x2x128xf32, #tpu.memory_space<vmem>>, vector<1x2x128xf32>
      tpu.vector_store %arg4[%c0_20, %c0_21, %c0_22], %17 {strides = array<i32>} : memref<1x2x128xf32, #tpu.memory_space<vmem>>, vector<1x2x128xf32>,
      %cst_23 = arith.constant 0.000000e+00 : f32
      %19 = vector.broadcast %cst_23 : f32 to vector<1x2x128xf32>
      %c0_24 = arith.constant 0 : index
      %c0_25 = arith.constant 0 : index
      %c0_26 = arith.constant 0 : index
      %20 = vector.load %arg5[%c0_24, %c0_25, %c0_26] : memref<1x2x128xf32, #tpu.memory_space<vmem>>, vector<1x2x128xf32>
      tpu.vector_store %arg5[%c0_24, %c0_25, %c0_26], %19 {strides = array<i32>} : memref<1x2x128xf32, #tpu.memory_space<vmem>>, vector<1x2x128xf32>,
    } else {
    }
    %c0 = arith.constant 0 : index
    %c0_1 = arith.constant 0 : index
    %c0_2 = arith.constant 0 : index
    %3 = vector.load %arg2[%c0, %c0_1, %c0_2] : memref<2x8x128xf32, #tpu.memory_space<vmem>>, vector<2x8x128xf32>
    %c0_3 = arith.constant 0 : index
    %c0_4 = arith.constant 0 : index
    %c0_5 = arith.constant 0 : index
    %4 = vector.load %arg3[%c0_3, %c0_4, %c0_5] : memref<2x8x128xf32, #tpu.memory_space<vmem>>, vector<2x8x128xf32>
    %5 = arith.subf %3, %4 : vector<2x8x128xf32>
    %c0_6 = arith.constant 0 : index
    %c0_7 = arith.constant 0 : index
    %c0_8 = arith.constant 0 : index
    %6 = vector.load %arg4[%c0_6, %c0_7, %c0_8] : memref<1x2x128xf32, #tpu.memory_space<vmem>>, vector<1x2x128xf32>
    %cst = arith.constant dense<0.000000e+00> : vector<2x128xf32>
    %7 = vector.multi_reduction <add>, %5, %cst [1] : vector<2x8x128xf32> to vector<2x128xf32>
    %8 = vector.shape_cast %7 : vector<2x128xf32> to vector<1x2x128xf32>
    %9 = arith.addf %6, %8 : vector<1x2x128xf32>
    %c0_9 = arith.constant 0 : index
    %c0_10 = arith.constant 0 : index
    %c0_11 = arith.constant 0 : index
    %10 = vector.load %arg4[%c0_9, %c0_10, %c0_11] : memref<1x2x128xf32, #tpu.memory_space<vmem>>, vector<1x2x128xf32>
    tpu.vector_store %arg4[%c0_9, %c0_10, %c0_11], %9 {strides = array<i32>} : memref<1x2x128xf32, #tpu.memory_space<vmem>>, vector<1x2x128xf32>,
    %c0_12 = arith.constant 0 : index
    %c0_13 = arith.constant 0 : index
    %c0_14 = arith.constant 0 : index
    %11 = vector.load %arg5[%c0_12, %c0_13, %c0_14] : memref<1x2x128xf32, #tpu.memory_space<vmem>>, vector<1x2x128xf32>
    %12 = arith.mulf %5, %5 : vector<2x8x128xf32>
    %cst_15 = arith.constant dense<0.000000e+00> : vector<2x128xf32>
    %13 = vector.multi_reduction <add>, %12, %cst_15 [1] : vector<2x8x128xf32> to vector<2x128xf32>
    %14 = vector.shape_cast %13 : vector<2x128xf32> to vector<1x2x128xf32>
    %15 = arith.addf %11, %14 : vector<1x2x128xf32>
    %c0_16 = arith.constant 0 : index
    %c0_17 = arith.constant 0 : index
    %c0_18 = arith.constant 0 : index
    %16 = vector.load %arg5[%c0_16, %c0_17, %c0_18] : memref<1x2x128xf32, #tpu.memory_space<vmem>>, vector<1x2x128xf32>
    tpu.vector_store %arg5[%c0_16, %c0_17, %c0_18], %15 {strides = array<i32>} : memref<1x2x128xf32, #tpu.memory_space<vmem>>, vector<1x2x128xf32>,
    return
  }
  func.func @transform_0(%arg0: i32, %arg1: i32) -> (i32, i32, i32) {
    %c1_i32 = arith.constant 1 : i32
    %0 = arith.muli %arg0, %c1_i32 : i32
    %1 = arith.addi %0, %arg1 : i32
    %c0_i32 = arith.constant 0 : i32
    %2 = arith.minsi %1, %c0_i32 : i32
    %c0_i32_0 = arith.constant 0 : i32
    %c0_i32_1 = arith.constant 0 : i32
    %c0_i32_2 = arith.constant 0 : i32
    return %c0_i32_0, %2, %c0_i32_1 : i32, i32, i32
  }
  func.func @transform_1(%arg0: i32, %arg1: i32) -> (i32, i32, i32) {
    %c1_i32 = arith.constant 1 : i32
    %0 = arith.muli %arg0, %c1_i32 : i32
    %1 = arith.addi %0, %arg1 : i32
    %c0_i32 = arith.constant 0 : i32
    %2 = arith.minsi %1, %c0_i32 : i32
    %c0_i32_0 = arith.constant 0 : i32
    %c0_i32_1 = arith.constant 0 : i32
    %c0_i32_2 = arith.constant 0 : i32
    return %c0_i32_0, %2, %c0_i32_1 : i32, i32, i32
  }
  func.func @transform_2(%arg0: i32, %arg1: i32) -> (i32, i32, i32) {
    %c0_i32 = arith.constant 0 : i32
    %c0_i32_0 = arith.constant 0 : i32
    %c0_i32_1 = arith.constant 0 : i32
    return %arg0, %c0_i32, %c0_i32_0 : i32, i32, i32
  }
  func.func @transform_3(%arg0: i32, %arg1: i32) -> (i32, i32, i32) {
    %c0_i32 = arith.constant 0 : i32
    %c0_i32_0 = arith.constant 0 : i32
    %c0_i32_1 = arith.constant 0 : i32
    return %arg0, %c0_i32, %c0_i32_0 : i32, i32, i32
  }
}

</mosaic_0001>

<llo_original>
// kernel: tpu_custom_call.1
$region0: #{tpu_custom_call.1}
  #allocation0 [shape = 'u32[]', space=smem, size = 0x4, offset = 0x4, fixed_abs, tag = 'smem constant byte address 0x4 - core index']
  #allocation1 [shape = 'u32[144,128]{1,0:T(1,128)}', space=vmem, size = 0x12000, scoped, tag = 'internal scratch']
  %s0 = inlined_call_operand.hbm [shape: f32[2,8,128], index: 0, kind: input, shape index: {}]
  %s1 = inlined_call_operand.hbm [shape: f32[2,8,128], index: 1, kind: input, shape index: {}]
  %s2 = inlined_call_operand.hbm [shape: f32[1,2,128], index: 2, kind: output, shape index: {0}]
  %s3 = inlined_call_operand.hbm [shape: f32[1,2,128], index: 3, kind: output, shape index: {1}]
  %4 = xla_tuple %s2, %s3
  %s5 = sld [smem:[#allocation0]]
  $region38: #{tpu_custom_call.1} parent=0
    _
  %s7 = ssub.s32 1, %s5
  %s8 = scalar_select 0, %s7, %s5
  $region1: #{tpu_custom_call.1} parent=0
    #allocation2 [shape = 'u8[8192]{0}', space=vmem, size = 0x2000, scoped, tag = 'input window, operand 0, single buffered']
    #allocation3 [shape = 's32[1]{0}', space=sflag, size = 0x4, scoped, tag = 'scoped memory for tpu_custom_call.1']
    #allocation4 [shape = 's32[1]{0}', space=sflag, size = 0x4, scoped, tag = 'scoped memory for tpu_custom_call.1']
    #allocation5 [shape = 'u8[8192]{0}', space=vmem, size = 0x2000, scoped, tag = 'input window, operand 1, single buffered']
    #allocation6 [shape = 's32[1]{0}', space=sflag, size = 0x4, scoped, tag = 'scoped memory for tpu_custom_call.1']
    #allocation7 [shape = 'u8[1024]{0}', space=vmem, size = 0x400, scoped, tag = 'output window, operand 0, single buffered']
    #allocation8 [shape = 'u8[1024]{0}', space=vmem, size = 0x400, scoped, tag = 'output window, operand 1, single buffered']
    #allocation9 [shape = 's32[1]{0}', space=sflag, size = 0x4, scoped, tag = 'scoped memory for tpu_custom_call.1']
    %9 = vsyncpa [#allocation3], 0
    %10 = vsyncpa [#allocation6], 0
    %11 = vsyncpa [#allocation4], 0
    %12 = vsyncpa [#allocation9], 0
    // Predicated region
    $region2: #{tpu_custom_call.1} parent=1 // pred_check
      _
    $region3: #{tpu_custom_call.1} parent=1 // pred_check_branch
      %14 = sbr.rel (0) target = $region5
    $region4: #{tpu_custom_call.1} parent=1 // pred_region
      %s15 = sadd.s32 0, 0
      %p16 = scmp.lt.s32.totalorder %s15, 0
      %s17 = scalar_select %p16, %s15, 0
      %s19 = ssub.s32 256, 256
      %20 = vsyncadd [#allocation3], %s19
      %s21 = smul.addr %s17, 128
      %s22 = scalar_lea.hbm %s0, %s21
      %s23 = sshll.u32 [#allocation2], 4
      %s24 = int_to_ptr.vmem [resolvable:$true] %s23
      %29 = dma.hbm_to_vmem [thread:$0]  %s22, 256, %s24, [#allocation3], 128, 128, 8
    $region5: #{tpu_custom_call.1} parent=1 // pred_fallthru
      _
    // Predicated region
    $region6: #{tpu_custom_call.1} parent=1 // pred_check
      _
    $region7: #{tpu_custom_call.1} parent=1 // pred_check_branch
      %31 = sbr.rel (0) target = $region9
    $region8: #{tpu_custom_call.1} parent=1 // pred_region
      %s32 = sadd.s32 0, 0
      %p33 = scmp.lt.s32.totalorder %s32, 0
      %s34 = scalar_select %p33, %s32, 0
      %s36 = ssub.s32 256, 256
      %37 = vsyncadd [#allocation6], %s36
      %s38 = smul.addr %s34, 128
      %s39 = scalar_lea.hbm %s1, %s38
      %s40 = sshll.u32 [#allocation5], 4
      %s41 = int_to_ptr.vmem [resolvable:$true] %s40
      %46 = dma.hbm_to_vmem [thread:$0]  %s39, 256, %s41, [#allocation6], 128, 128, 8
    $region9: #{tpu_custom_call.1} parent=1 // pred_fallthru
      _
    // Predicated region
    $region10: #{tpu_custom_call.1} parent=1 // pred_check
      _
    $region11: #{tpu_custom_call.1} parent=1 // pred_check_branch
      %48 = sbr.rel (0) target = $region13
    $region12: #{tpu_custom_call.1} parent=1 // pred_region
      %49 = dma.done [#allocation3], 256
    $region13: #{tpu_custom_call.1} parent=1 // pred_fallthru
      _
    // Predicated region
    $region14: #{tpu_custom_call.1} parent=1 // pred_check
      _
    $region15: #{tpu_custom_call.1} parent=1 // pred_check_branch
      %51 = sbr.rel (0) target = $region17
    $region16: #{tpu_custom_call.1} parent=1 // pred_region
      %52 = dma.done [#allocation6], 256
    $region17: #{tpu_custom_call.1} parent=1 // pred_fallthru
      _
    %s53 = sadd.s32 0, 0
    %p54 = scmp.lt.s32.totalorder %s53, 0
    %s55 = scalar_select %p54, %s53, 0
    %s56 = sadd.s32 0, 0
    %p57 = scmp.lt.s32.totalorder %s56, 0
    %s58 = scalar_select %p57, %s56, 0
    %p59 = scmp.eq.s32.totalorder 0, 0
    // Predicated region
    $region18: #{tpu_custom_call.1} parent=1 // pred_check
      %p60 = pneg %p59
    $region19: #{tpu_custom_call.1} parent=1 // pred_check_branch
      %62 = sbr.rel (%p60) target = $region21
    $region20: #{tpu_custom_call.1} parent=1 // pred_region
      %63 = vst [vmem:[#allocation7] sm:$0x3] 0.0
      %64 = vst [vmem:[#allocation8] sm:$0x3] 0.0
    $region21: #{tpu_custom_call.1} parent=1 // pred_fallthru
      _
    %v65 = vld [vmem:[#allocation2] sm:$0xff]
    %v66 = vld [vmem:[#allocation2 + $0x8] sm:$0xff]
    %v67 = vld [vmem:[#allocation5] sm:$0xff]
    %v68 = vld [vmem:[#allocation5 + $0x8] sm:$0xff]
    %v69 = vsub.f32 %v65, %v67
    %v70 = vsub.f32 %v66, %v68
    %v71 = vld [vmem:[#allocation7] sm:$0x3]
    %v72 = vrot.slane %v69, 4
    %v73 = vadd.f32 %v69, %v72
    %v74 = vrot.slane %v73, 2
    %v75 = vadd.f32 %v73, %v74
    %v76 = vrot.slane %v75, 1
    %v77 = vadd.f32 %v75, %v76
    %v78 = vrot.slane %v70, 4
    %v79 = vadd.f32 %v70, %v78
    %v80 = vrot.slane %v79, 2
    %v81 = vadd.f32 %v79, %v80
    %v82 = vrot.slane %v81, 1
    %v83 = vadd.f32 %v81, %v82
    %vm86 = vcmask 1041409
    %v87 = vsel %vm86, %v83, %v77
    %v89 = vadd.f32 %v71, %v87
    %90 = vst [vmem:[#allocation7] sm:$0x3] %v89
    %v91 = vld [vmem:[#allocation8] sm:$0x3]
    %v92 = vmul.f32 %v69, %v69
    %v93 = vmul.f32 %v70, %v70
    %v94 = vrot.slane %v92, 4
    %v95 = vadd.f32 %v92, %v94
    %v96 = vrot.slane %v95, 2
    %v97 = vadd.f32 %v95, %v96
    %v98 = vrot.slane %v97, 1
    %v99 = vadd.f32 %v97, %v98
    %v100 = vrot.slane %v93, 4
    %v101 = vadd.f32 %v93, %v100
    %v102 = vrot.slane %v101, 2
    %v103 = vadd.f32 %v101, %v102
    %v104 = vrot.slane %v103, 1
    %v105 = vadd.f32 %v103, %v104
    %v108 = vsel %vm86, %v105, %v99
    %v110 = vadd.f32 %v91, %v108
    %111 = vst [vmem:[#allocation8] sm:$0x3] %v110
    // Predicated region
    $region22: #{tpu_custom_call.1} parent=1 // pred_check
      _
    $region23: #{tpu_custom_call.1} parent=1 // pred_check_branch
      %113 = sbr.rel (0) target = $region25
    $region24: #{tpu_custom_call.1} parent=1 // pred_region
      %s115 = ssub.s32 32, 32
      %116 = vsyncadd [#allocation4], %s115
      %s118 = sshll.u32 [#allocation7], 4
      %s119 = int_to_ptr.vmem [resolvable:$true] %s118
      %121 = dma.vmem_to_hbm [thread:$0]  %s119, 32, %s2, [#allocation4]
    $region25: #{tpu_custom_call.1} parent=1 // pred_fallthru
      _
    // Predicated region
    $region26: #{tpu_custom_call.1} parent=1 // pred_check
      _
    $region27: #{tpu_custom_call.1} parent=1 // pred_check_branch
      %123 = sbr.rel (0) target = $region29
    $region28: #{tpu_custom_call.1} parent=1 // pred_region
      %s125 = ssub.s32 32, 32
      %126 = vsyncadd [#allocation9], %s125
      %s128 = sshll.u32 [#allocation8], 4
      %s129 = int_to_ptr.vmem [resolvable:$true] %s128
      %131 = dma.vmem_to_hbm [thread:$0]  %s129, 32, %s3, [#allocation9]
    $region29: #{tpu_custom_call.1} parent=1 // pred_fallthru
      _
    // Predicated region
    $region30: #{tpu_custom_call.1} parent=1 // pred_check
      _
    $region31: #{tpu_custom_call.1} parent=1 // pred_check_branch
      %133 = sbr.rel (0) target = $region33
    $region32: #{tpu_custom_call.1} parent=1 // pred_region
      %134 = dma.done [#allocation4], 32
    $region33: #{tpu_custom_call.1} parent=1 // pred_fallthru
      _
    // Predicated region
    $region34: #{tpu_custom_call.1} parent=1 // pred_check
      _
    $region35: #{tpu_custom_call.1} parent=1 // pred_check_branch
      %136 = sbr.rel (0) target = $region37
    $region36: #{tpu_custom_call.1} parent=1 // pred_region
      %137 = dma.done [#allocation9], 32
    $region37: #{tpu_custom_call.1} parent=1 // pred_fallthru
      _
    %138 = vsyncpa [#allocation3], 1
    %139 = vsyncpa [#allocation6], 1
    %140 = vsyncpa [#allocation4], 1
    %141 = vsyncpa [#allocation9], 1

</llo_original>
